<compile_context>
chip_gen: v5e
topology: v5e:2x2
jax: 0.10.0
libtpu: 0.0.40
codegen_flags: <defaults>
</compile_context>

<pallas_src>
import functools
import math

import jax
import jax.numpy as jnp
from jax.experimental import pallas as pl
from jax.experimental.pallas import tpu as pltpu


# --------------------------------------------------------------------------
# Kernels
# --------------------------------------------------------------------------
def _wnorm_cast_kernel(w_ref, wn_ref, *, eps2, c_total):
    # w_ref : (E, cn) f32 raw weight tile.  The last class tile may be ragged;
    #         columns >= c_total are undefined (OOB read) and are explicitly
    #         masked to zero here -- never trust OOB contents.
    # wn_ref: (E, cn) matmul-dtype normalized weight tile (tail columns = 0).
    j = pl.program_id(0)
    cn = w_ref.shape[1]
    w = w_ref[...]
    col = j * cn + jax.lax.broadcasted_iota(jnp.int32, (1, cn), 1)
    w = jnp.where(col < c_total, w, 0.0)
    # F.normalize(..., eps=1e-12): 1/max(||w||,1e-12) == rsqrt(max(ss, 1e-24))
    inv = jax.lax.rsqrt(
        jnp.maximum(jnp.sum(w * w, axis=0, keepdims=True), eps2))
    wn_ref[...] = (w * inv).astype(wn_ref.dtype)


def _emb_diff_kernel(emb_ref, wlab_ref, emb_s_ref, diff_ref, *, scale, margin,
                     eps2):
    # emb_ref:  (B_pad, E) f32   raw embeddings
    # wlab_ref: (B_pad, E) f32   w[:, label[b]] per row (raw, un-normalized)
    # emb_s_ref:(B_pad, E) matmul dtype  -> normalize(emb) * scale
    # diff_ref: (B_pad, 1) f32   arcface margin diff (broadcast later over C)
    emb = emb_ref[...]
    wl = wlab_ref[...]

    inv_e = jax.lax.rsqrt(
        jnp.maximum(jnp.sum(emb * emb, axis=1, keepdims=True), eps2))
    emb_n = emb * inv_e
    emb_s_ref[...] = (emb_n * scale).astype(emb_s_ref.dtype)

    inv_w = jax.lax.rsqrt(
        jnp.maximum(jnp.sum(wl * wl, axis=1, keepdims=True), eps2))
    cos_t = jnp.sum(emb_n * wl, axis=1, keepdims=True) * inv_w     # (B_pad, 1)
    # Numerical safety: rounding can push |cos| slightly above 1.
    cos_t = jnp.clip(cos_t, -1.0, 1.0)
    zy = cos_t * scale

    cos_m = math.cos(margin)
    sin_m = math.sin(margin)
    mx_mm = math.sin(math.pi - margin)
    threshold = math.cos(math.pi - margin)

    cond_v = cos_t - threshold
    sin_t = jnp.sqrt(jnp.maximum(1.0 - cos_t * cos_t, 0.0))
    new_zy = (cos_t * cos_m - sin_t * sin_m) * scale
    zy_keep = zy - scale * mx_mm
    new_zy = jnp.where(cond_v <= 0.0, zy_keep, new_zy)
    diff_ref[...] = new_zy - zy


def _arcface_main_kernel(emb_s_ref, wn_ref, diff_ref, out_ref):
    # emb_s_ref: (B_pad, E)  matmul dtype (resident across the class grid)
    # wn_ref:    (E, cn)     matmul dtype, pre-normalized weight tile
    # diff_ref:  (B_pad, 1)  f32 (resident)
    # out_ref:   (B_pad, cn) f32
    cos = jnp.dot(emb_s_ref[...], wn_ref[...],
                  preferred_element_type=jnp.float32)
    out_ref[...] = cos + diff_ref[...]


# --------------------------------------------------------------------------
# Wrapper
# --------------------------------------------------------------------------
def _round_up(x, n):
    return ((x + n - 1) // n) * n


def _default_vmem_limit():
    # Size the scoped-VMEM limit from the actual chip (64 MiB/TC on v7x,
    # 128 MiB on v5e/v6e), leaving ~25% headroom for compiler scratch.
    try:
        cap = int(pltpu.get_tpu_info().vmem_capacity_bytes)
    except Exception:
        cap = 64 * 1024 * 1024          # conservative fallback (v7x per-TC)
    return min((cap * 3) // 4, 100 * 1024 * 1024)


def arcface_mxnet_like(embeddings, label, kernel, *, s=64.0, m=0.5,
                       cn=None, matmul_dtype=jnp.bfloat16,
                       vmem_limit_bytes=None):
    """Forward pass of Arcface_mxnet_like.

    embeddings: (B, E) float
    label:      (B,)   int in [0, C)
    kernel:     (E, C) float
    returns:    (B, C) float32
    """
    B, E = embeddings.shape
    E2, C = kernel.shape
    assert E == E2
    eps2 = 1e-24  # (1e-12)^2, matching F.normalize eps

    embeddings = embeddings.astype(jnp.float32)
    kernel = kernel.astype(jnp.float32)
    label = label.astype(jnp.int32)

    if vmem_limit_bytes is None:
        vmem_limit_bytes = _default_vmem_limit()

    mm_bytes = jnp.dtype(matmul_dtype).itemsize
    B_pad = _round_up(B, 8)

    # ---- class tile size: big tiles minimize per-grid-step overhead and give
    #      large unmasked lane-dense stores.  Shrink until the (double
    #      buffered) main-kernel working set fits the VMEM budget.
    if cn is None:
        cn = 4096 if vmem_limit_bytes >= 80 * 1024 * 1024 else 2048
        cn = min(cn, _round_up(C, 128))

        def _working_set(c):
            return (2 * (E * c * mm_bytes)          # weight tile (dbl-buf)
                    + 2 * (B_pad * c * 4)           # f32 out tile (dbl-buf)
                    + 2 * (B_pad * E * mm_bytes)    # resident emb_s
                    + 2 * (B_pad * 4))              # resident diff

        while cn > 256 and _working_set(cn) > int(0.6 * vmem_limit_bytes):
            cn //= 2
    cn = max(128, _round_up(min(cn, _round_up(C, 128)), 128))

    n_ct = pl.cdiv(C, cn)
    C_pad = n_ct * cn

    # ---- tiny batch padding only (row count must be a multiple of 8) ----
    if B_pad != B:
        embeddings = jnp.pad(embeddings, ((0, B_pad - B), (0, 0)))

    # TODO(synk): the per-row w[:, label] column gather is data dependent with
    # arbitrary stride; it stays in XLA (only O(B*E) useful bytes).  Replace
    # with a PrefetchScalarGridSpec DMA gather only if it shows in the profile.
    w_lab = jnp.take(kernel, label, axis=1).T          # (B, E) f32
    if B_pad != B:
        w_lab = jnp.pad(w_lab, ((0, B_pad - B), (0, 0)))

    # ---- pre-pass 1: fused column-normalize + cast + tail zero-fill.
    #      One streaming pass over the f32 weight; no XLA pad/astype passes.
    w_n = pl.pallas_call(
        functools.partial(_wnorm_cast_kernel, eps2=eps2, c_total=C),
        out_shape=jax.ShapeDtypeStruct((E, C_pad), matmul_dtype),
        grid=(n_ct,),
        in_specs=[pl.BlockSpec((E, cn), lambda j: (0, j))],
        out_specs=pl.BlockSpec((E, cn), lambda j: (0, j)),
        compiler_params=pltpu.CompilerParams(
            dimension_semantics=("parallel",),
            vmem_limit_bytes=vmem_limit_bytes),
    )(kernel)

    # ---- pre-pass 2: normalized/scaled embeddings + per-row margin diff ----
    emb_s, diff = pl.pallas_call(
        functools.partial(_emb_diff_kernel, scale=float(s), margin=float(m),
                          eps2=eps2),
        out_shape=(jax.ShapeDtypeStruct((B_pad, E), matmul_dtype),
                   jax.ShapeDtypeStruct((B_pad, 1), jnp.float32)),
        grid=(1,),
        in_specs=[pl.BlockSpec((B_pad, E), lambda i: (0, 0)),
                  pl.BlockSpec((B_pad, E), lambda i: (0, 0))],
        out_specs=(pl.BlockSpec((B_pad, E), lambda i: (0, 0)),
                   pl.BlockSpec((B_pad, 1), lambda i: (0, 0))),
        compiler_params=pltpu.CompilerParams(
            dimension_semantics=("arbitrary",),
            vmem_limit_bytes=vmem_limit_bytes),
    )(embeddings, w_lab)

    # ---- main kernel: 1-D grid over class tiles, full batch resident ----
    # Output has the *unpadded* class extent: the ragged last class tile is
    # handled by Pallas' masked edge-block writes, so no final slice copy.
    out = pl.pallas_call(
        _arcface_main_kernel,
        out_shape=jax.ShapeDtypeStruct((B_pad, C), jnp.float32),
        grid=(n_ct,),
        in_specs=[
            pl.BlockSpec((B_pad, E), lambda j: (0, 0)),   # emb_s (resident)
            pl.BlockSpec((E, cn), lambda j: (0, j)),      # normalized w tile
            pl.BlockSpec((B_pad, 1), lambda j: (0, 0)),   # per-row diff
        ],
        out_specs=pl.BlockSpec((B_pad, cn), lambda j: (0, j)),
        compiler_params=pltpu.CompilerParams(
            dimension_semantics=("parallel",),
            vmem_limit_bytes=vmem_limit_bytes),
    )(emb_s, w_n, diff)

    if B_pad != B:
        out = out[:B]
    return out


# --------------------------------------------------------------------------
# Pure-JAX reference (mirrors the PyTorch module)
# --------------------------------------------------------------------------
def _reference(embeddings, label, kernel, s=64.0, m=0.5):
    emb_n = embeddings / jnp.maximum(
        jnp.linalg.norm(embeddings, axis=1, keepdims=True), 1e-12)
    w_n = kernel / jnp.maximum(
        jnp.linalg.norm(kernel, axis=0, keepdims=True), 1e-12)
    cos_theta = (emb_n * s) @ w_n
    zy = jnp.take_along_axis(cos_theta, label.reshape(-1, 1), axis=1)
    cos_t = zy / s
    cond_v = cos_t - math.cos(math.pi - m)
    sin_t = jnp.sqrt(1.0 - cos_t * cos_t)
    new_zy = (cos_t * math.cos(m) - sin_t * math.sin(m)) * s
    zy_keep = zy - s * math.sin(math.pi - m)
    new_zy = jnp.where(cond_v <= 0, zy_keep, new_zy)
    return cos_theta + (new_zy - zy)


if __name__ == "__main__":
    # Small shapes consistent with the module (real defaults: E=512, C=51332).
    B, E, C = 8, 32, 256
    s, m = 64.0, 0.5

    key = jax.random.PRNGKey(0)
    k_emb, k_lab, k_w = jax.random.split(key, 3)
    embeddings = jax.random.normal(k_emb, (B, E), dtype=jnp.float32)
    label = jax.random.randint(k_lab, (B,), 0, C, dtype=jnp.int32)
    kernel = jax.random.normal(k_w, (E, C), dtype=jnp.float32)

    ref = _reference(embeddings, label, kernel, s=s, m=m)

    # f32 matmul path: tight check against the reference.
    out_f32 = arcface_mxnet_like(embeddings, label, kernel, s=s, m=m,
                                 matmul_dtype=jnp.float32)
    out_f32 = jax.block_until_ready(out_f32)
    assert out_f32.shape == (B, C)
    assert jnp.allclose(out_f32, ref, rtol=1e-3, atol=1e-3), \
        "f32 kernel mismatch vs reference"

    # bf16 matmul path (default, MXU-friendly): loose check.
    out_bf16 = arcface_mxnet_like(embeddings, label, kernel, s=s, m=m,
                                  matmul_dtype=jnp.bfloat16)
    out_bf16 = jax.block_until_ready(out_bf16)
    assert out_bf16.shape == (B, C)
    assert bool(jnp.all(jnp.isfinite(out_bf16)))
    assert jnp.allclose(out_bf16, ref, rtol=5e-2, atol=5e-1), \
        "bf16 kernel mismatch vs reference"

    print("KERNEL_OK")
</pallas_src>

<mosaic_0001>
module attributes {stable_mosaic.version = 11 : i64} {
  func.func @_wnorm_cast_kernel(%arg0: i32, %arg1: memref<32x256xf32, #tpu.memory_space<vmem>>, %arg2: memref<32x256xf32, #tpu.memory_space<vmem>>) attributes {dimension_semantics = [#tpu.dimension_semantics<parallel>], iteration_bounds = array<i64: 1>, scalar_prefetch = 0 : i64, scratch_operands = 0 : i64, tpu.core_type = #tpu.core_type<tc>, window_params = [{transform_indices = @transform_0, window_bounds = array<i64: 32, 256>}, {transform_indices = @transform_1, window_bounds = array<i64: 32, 256>}]} {
    %c0 = arith.constant 0 : index
    %c0_0 = arith.constant 0 : index
    %0 = vector.load %arg1[%c0, %c0_0] : memref<32x256xf32, #tpu.memory_space<vmem>>, vector<32x256xf32>
    %c256_i32 = arith.constant 256 : i32
    %1 = arith.muli %arg0, %c256_i32 : i32
    %2 = tpu.iota {dimensions = array<i32: 1>} : vector<1x256xi32>
    %3 = vector.broadcast %1 : i32 to vector<1x256xi32>
    %4 = arith.addi %3, %2 : vector<1x256xi32>
    %c256_i32_1 = arith.constant 256 : i32
    %5 = vector.broadcast %c256_i32_1 : i32 to vector<1x256xi32>
    %6 = arith.cmpi slt, %4, %5 : vector<1x256xi32>
    %cst = arith.constant 0.000000e+00 : f32
    %7 = vector.shape_cast %6 : vector<1x256xi1> to vector<1x256xi1>
    %8 = vector.broadcast %7 : vector<1x256xi1> to vector<32x256xi1>
    %9 = vector.broadcast %cst : f32 to vector<32x256xf32>
    %10 = arith.select %8, %0, %9 : vector<32x256xi1>, vector<32x256xf32>
    %11 = arith.mulf %10, %10 : vector<32x256xf32>
    %cst_2 = arith.constant dense<0.000000e+00> : vector<256xf32>
    %12 = vector.multi_reduction <add>, %11, %cst_2 [0] : vector<32x256xf32> to vector<256xf32>
    %13 = vector.shape_cast %12 : vector<256xf32> to vector<1x256xf32>
    %cst_3 = arith.constant 1.000000e-24 : f32
    %14 = vector.broadcast %cst_3 : f32 to vector<1x256xf32>
    %15 = arith.maximumf %13, %14 : vector<1x256xf32>
    %16 = math.rsqrt %15 : vector<1x256xf32>
    %17 = vector.broadcast %16 : vector<1x256xf32> to vector<32x256xf32>
    %18 = arith.mulf %10, %17 : vector<32x256xf32>
    %c0_4 = arith.constant 0 : index
    %c0_5 = arith.constant 0 : index
    %19 = vector.load %arg2[%c0_4, %c0_5] : memref<32x256xf32, #tpu.memory_space<vmem>>, vector<32x256xf32>
    tpu.vector_store %arg2[%c0_4, %c0_5], %18 {strides = array<i32>} : memref<32x256xf32, #tpu.memory_space<vmem>>, vector<32x256xf32>,
    return
  }
  func.func @transform_0(%arg0: i32) -> (i32, i32) {
    %c0_i32 = arith.constant 0 : i32
    %c0_i32_0 = arith.constant 0 : i32
    return %c0_i32, %arg0 : i32, i32
  }
  func.func @transform_1(%arg0: i32) -> (i32, i32) {
    %c0_i32 = arith.constant 0 : i32
    %c0_i32_0 = arith.constant 0 : i32
    return %c0_i32, %arg0 : i32, i32
  }
}

</mosaic_0001>

<llo_original>
// kernel: tpu_custom_call.1
$region0: #{tpu_custom_call.1}
  #allocation0 [shape = 'u32[]', space=smem, size = 0x4, offset = 0x4, fixed_abs, tag = 'smem constant byte address 0x4 - core index']
  #allocation1 [shape = 'u32[72,128]{1,0:T(1,128)}', space=vmem, size = 0x9000, scoped, tag = 'internal scratch']
  %s0 = inlined_call_operand.hbm [shape: f32[32,256], index: 0, kind: input, shape index: {}]
  %s1 = inlined_call_operand.hbm [shape: f32[32,256], index: 1, kind: output, shape index: {}]
  %s2 = sld [smem:[#allocation0]]
  $region18: #{tpu_custom_call.1} parent=0
    _
  %s4 = ssub.s32 1, %s2
  %s5 = scalar_select 0, %s4, %s2
  $region1: #{tpu_custom_call.1} parent=0
    #allocation2 [shape = 'u8[32768]{0}', space=vmem, size = 0x8000, scoped, tag = 'input window, operand 0, single buffered']
    #allocation3 [shape = 's32[1]{0}', space=sflag, size = 0x4, scoped, tag = 'scoped memory for tpu_custom_call.1']
    #allocation4 [shape = 's32[1]{0}', space=sflag, size = 0x4, scoped, tag = 'scoped memory for tpu_custom_call.1']
    #allocation5 [shape = 'u8[32768]{0}', space=vmem, size = 0x8000, scoped, tag = 'output window, operand 0, single buffered']
    %6 = vsyncpa [#allocation3], 0
    %7 = vsyncpa [#allocation4], 0
    // Predicated region
    $region2: #{tpu_custom_call.1} parent=1 // pred_check
      _
    $region3: #{tpu_custom_call.1} parent=1 // pred_check_branch
      %9 = sbr.rel (0) target = $region5
    $region4: #{tpu_custom_call.1} parent=1 // pred_region
      %11 = vsyncadd [#allocation3], 0
      %s12 = sshll.u32 %s0, 4
      %s13 = int_to_ptr.hbm [resolvable:$true] %s12
      %s14 = sshll.u32 [#allocation2], 4
      %s15 = int_to_ptr.vmem [resolvable:$true] %s14
      %20 = dma.hbm_to_vmem [thread:$0]  %s13, 1024, %s15, [#allocation3], 256, 256, 16
    $region5: #{tpu_custom_call.1} parent=1 // pred_fallthru
      _
    // Predicated region
    $region6: #{tpu_custom_call.1} parent=1 // pred_check
      _
    $region7: #{tpu_custom_call.1} parent=1 // pred_check_branch
      %22 = sbr.rel (0) target = $region9
    $region8: #{tpu_custom_call.1} parent=1 // pred_region
      %24 = dma.done [#allocation3], 1024
    $region9: #{tpu_custom_call.1} parent=1 // pred_fallthru
      _
    %v25 = vld [vmem:[#allocation2] sm:$0xff]
    %v26 = vld [vmem:[#allocation2 + $0x8] sm:$0xff]
    %v27 = vld [vmem:[#allocation2 + $0x10] sm:$0xff]
    %v28 = vld [vmem:[#allocation2 + $0x18] sm:$0xff]
    %v29 = vld [vmem:[#allocation2 + $0x20] sm:$0xff]
    %v30 = vld [vmem:[#allocation2 + $0x28] sm:$0xff]
    %v31 = vld [vmem:[#allocation2 + $0x30] sm:$0xff]
    %v32 = vld [vmem:[#allocation2 + $0x38] sm:$0xff]
    %s33 = smul.u32 0, 256
    %v34 = vlaneseq
    %v35 = vand.u32 %v34, 127
    %v36 = vadd.s32 %v35, 128
    %v37 = vstv %s33
    %v38 = vadd.s32 %v37, %v35
    %v39 = vadd.s32 %v37, %v36
    %vm40 = vcmp.lt.s32.totalorder %v38, 256
    %vm41 = vcmp.lt.s32.totalorder %v39, 256
    %v42 = vsel %vm40, 1, 0
    %v43 = vsel %vm41, 1, 0
    %vm44 = vcmp.eq.s32.totalorder %v42, 1
    %vm45 = vcmp.eq.s32.totalorder %v43, 1
    %v46 = vsel %vm44, %v25, 0.0
    %v47 = vsel %vm45, %v26, 0.0
    %v48 = vsel %vm44, %v27, 0.0
    %v49 = vsel %vm45, %v28, 0.0
    %v50 = vsel %vm44, %v29, 0.0
    %v51 = vsel %vm45, %v30, 0.0
    %v52 = vsel %vm44, %v31, 0.0
    %v53 = vsel %vm45, %v32, 0.0
    %v54 = vmul.f32 %v46, %v46
    %v55 = vmul.f32 %v47, %v47
    %v56 = vmul.f32 %v48, %v48
    %v57 = vmul.f32 %v49, %v49
    %v58 = vmul.f32 %v50, %v50
    %v59 = vmul.f32 %v51, %v51
    %v60 = vmul.f32 %v52, %v52
    %v61 = vmul.f32 %v53, %v53
    %v62 = vadd.f32 %v54, %v56
    %v63 = vadd.f32 %v62, %v58
    %v64 = vadd.f32 %v63, %v60
    %v65 = vrot.slane %v64, 4
    %v66 = vadd.f32 %v64, %v65
    %v67 = vrot.slane %v66, 2
    %v68 = vadd.f32 %v66, %v67
    %v69 = vrot.slane %v68, 1
    %v70 = vadd.f32 %v68, %v69
    %v71 = vadd.f32 %v55, %v57
    %v72 = vadd.f32 %v71, %v59
    %v73 = vadd.f32 %v72, %v61
    %v74 = vrot.slane %v73, 4
    %v75 = vadd.f32 %v73, %v74
    %v76 = vrot.slane %v75, 2
    %v77 = vadd.f32 %v75, %v76
    %v78 = vrot.slane %v77, 1
    %v79 = vadd.f32 %v77, %v78
    %v80 = vmax.f32 %v70, 1e-24
    %v81 = vmax.f32 %v79, 1e-24
    %v82 = vrsqrt.pop %v80
    %v83 = vmul.f32 %v82, %v80
    %v84 = vmul.f32 %v83, %v82
    %v85 = vmul.f32 0.5, %v84
    %v86 = vsub.f32 1.5, %v85
    %v87 = vmul.f32 %v82, %v86
    %vm88 = vweird.f32 %v80
    %vm89 = vweird.f32 %v82
    %vm90 = vmor %vm88, %vm89
    %v91 = vsel %vm90, %v82, %v87
    %v92 = vrsqrt.pop %v81
    %v93 = vmul.f32 %v92, %v81
    %v94 = vmul.f32 %v93, %v92
    %v95 = vmul.f32 0.5, %v94
    %v96 = vsub.f32 1.5, %v95
    %v97 = vmul.f32 %v92, %v96
    %vm98 = vweird.f32 %v81
    %vm99 = vweird.f32 %v92
    %vm100 = vmor %vm98, %vm99
    %v101 = vsel %vm100, %v92, %v97
    %v102 = vmul.f32 %v46, %v91
    %v103 = vmul.f32 %v47, %v101
    %v104 = vmul.f32 %v48, %v91
    %v105 = vmul.f32 %v49, %v101
    %v106 = vmul.f32 %v50, %v91
    %v107 = vmul.f32 %v51, %v101
    %v108 = vmul.f32 %v52, %v91
    %v109 = vmul.f32 %v53, %v101
    %110 = vst [vmem:[#allocation5] sm:$0xff] %v102
    %111 = vst [vmem:[#allocation5 + $0x8] sm:$0xff] %v103
    %112 = vst [vmem:[#allocation5 + $0x10] sm:$0xff] %v104
    %113 = vst [vmem:[#allocation5 + $0x18] sm:$0xff] %v105
    %114 = vst [vmem:[#allocation5 + $0x20] sm:$0xff] %v106
    %115 = vst [vmem:[#allocation5 + $0x28] sm:$0xff] %v107
    %116 = vst [vmem:[#allocation5 + $0x30] sm:$0xff] %v108
    %117 = vst [vmem:[#allocation5 + $0x38] sm:$0xff] %v109
    // Predicated region
    $region10: #{tpu_custom_call.1} parent=1 // pred_check
      _
    $region11: #{tpu_custom_call.1} parent=1 // pred_check_branch
      %119 = sbr.rel (0) target = $region13
    $region12: #{tpu_custom_call.1} parent=1 // pred_region
      %121 = vsyncadd [#allocation4], 0
      %s122 = sshll.u32 [#allocation5], 4
      %s123 = int_to_ptr.vmem [resolvable:$true] %s122
      %s124 = sshll.u32 %s1, 4
      %s125 = int_to_ptr.hbm [resolvable:$true] %s124
      %130 = dma.vmem_to_hbm [thread:$0]  %s123, 1024, %s125, [#allocation4], 256, 256, 16
    $region13: #{tpu_custom_call.1} parent=1 // pred_fallthru
      _
    // Predicated region
    $region14: #{tpu_custom_call.1} parent=1 // pred_check
      _
    $region15: #{tpu_custom_call.1} parent=1 // pred_check_branch
      %132 = sbr.rel (0) target = $region17
    $region16: #{tpu_custom_call.1} parent=1 // pred_region
      %134 = dma.done [#allocation4], 1024
    $region17: #{tpu_custom_call.1} parent=1 // pred_fallthru
      _
    %135 = vsyncpa [#allocation3], 1
    %136 = vsyncpa [#allocation4], 1

</llo_original>
